<compile_context>
chip_gen: v5e
topology: v5e:2x2
jax: 0.10.0
libtpu: 0.0.40
codegen_flags: <defaults>
</compile_context>

<pallas_src>
import jax
import jax.numpy as jnp
from jax import lax
from jax.experimental import pallas as pl
from jax.experimental.pallas import tpu as pltpu


def _leaky_relu(x, slope=0.2):
    return jnp.where(x > 0, x, slope * x)


def _round_up(v, m):
    return -(-v // m) * m


def _make_kernel(f, h, row_wext, row_wdst):
    def kernel(x_ref, adjb_ref, wpack_ref, vecs_ref, out_ref):
        x = x_ref[...]                         # [N, F] f32
        adj_bias = adjb_ref[...]               # [N, N] f32 (0 / -1e30)

        bm      = vecs_ref[0:1, 0:h]           # [1, H] Seq bias
        mask1   = vecs_ref[1:2, 0:f]           # [1, F] conv1 slab (cols [0:C))
        mask2   = vecs_ref[2:3, 0:f]           # [1, F] conv2 slab (cols [C:2C))
        colmask = vecs_ref[3:4, 0:f]           # [1, F] one-hot on column 2C

        wm    = wpack_ref[0:f, 0:h]                    # [F, H] bf16
        w_ext = wpack_ref[row_wext:row_wext + h, :]    # [H, W] bf16 (z slabs + src cols)
        wd    = wpack_ref[row_wdst:row_wdst + 2, 0:h]  # [2, H] bf16 folded dst vecs

        # ---- Seq (Linear) + ReLU ----
        x0 = jnp.maximum(
            jnp.dot(x.astype(jnp.bfloat16), wm,
                    preferred_element_type=jnp.float32) + bm, 0.0)          # [N, H]
        x0_b = x0.astype(jnp.bfloat16)

        # ---- single fused projection for both convs; cols F / F+1 hold the
        #      folded src attention logits ----
        z_ext = jnp.dot(x0_b, w_ext, preferred_element_type=jnp.float32)    # [N, W]
        z_b = z_ext[:, 0:f].astype(jnp.bfloat16)                            # [N, F]

        # ---- dst attention logits for both convs in one rank-2 MXU pass
        #      (independent of z_ext -> shorter critical path) ----
        s_dst = lax.dot_general(wd, x0_b, (((1,), (1,)), ((), ())),
                                preferred_element_type=jnp.float32)         # [2, N]

        def attn_agg(i):
            s_src = z_ext[:, f + i:f + i + 1]                               # [N, 1]
            e = _leaky_relu(s_src + s_dst[i:i + 1, :]) + adj_bias           # [N, N]
            # masked softmax over incoming neighbours (self-loops guarantee a
            # finite row max, so masked entries underflow to exactly 0).
            p = jnp.exp(e - jnp.max(e, axis=-1, keepdims=True))
            alpha = p * pl.reciprocal(jnp.sum(p, axis=-1, keepdims=True),
                                      approx=True)
            return jnp.dot(alpha.astype(jnp.bfloat16), z_b,
                           preferred_element_type=jnp.float32)              # [N, F]

        # x1 = relu(conv1(x0)); dropout is identity in eval mode
        x1 = jnp.maximum(attn_agg(0), 0.0) * mask1
        # x2 = conv2(x0)
        x2 = attn_agg(1) * mask2
        # x3 = per-node max over the hidden dim, scattered into column 2C
        x3 = jnp.max(x0, axis=-1, keepdims=True) * colmask

        # cat([x1, x2, x3], -1) + x  (disjoint slabs -> a sum), then log_softmax
        y = x1 + x2 + x3 + x
        y = y - jnp.max(y, axis=-1, keepdims=True)
        out_ref[...] = y - jnp.log(jnp.sum(jnp.exp(y), axis=-1, keepdims=True))

    return kernel


def pack_params(wm, bm, w1, a1, w2, a2, num_classes):
    """Pack all parameters into one bf16 weight block + one f32 vector block."""
    f, h = wm.shape
    c = num_classes
    width = max(h, f + 2)
    row_wext = _round_up(f, 16)               # bf16 sublane-tile aligned offsets
    row_wdst = row_wext + _round_up(h, 16)
    rows = row_wdst + 2

    wpack = jnp.zeros((rows, width), jnp.float32)
    wpack = wpack.at[0:f, 0:h].set(wm)                               # Seq weight
    wpack = wpack.at[row_wext:row_wext + h, 0:c].set(w1)             # conv1 slab
    wpack = wpack.at[row_wext:row_wext + h, c:2 * c].set(w2)         # conv2 slab
    wpack = wpack.at[row_wext:row_wext + h, f].set(w1 @ a1[0])       # folded src 1
    wpack = wpack.at[row_wext:row_wext + h, f + 1].set(w2 @ a2[0])   # folded src 2
    wpack = wpack.at[row_wdst, 0:h].set(w1 @ a1[1])                  # folded dst 1
    wpack = wpack.at[row_wdst + 1, 0:h].set(w2 @ a2[1])              # folded dst 2
    wpack = wpack.astype(jnp.bfloat16)

    vecs = jnp.zeros((4, max(h, f)), jnp.float32)
    vecs = vecs.at[0, 0:h].set(bm)
    vecs = vecs.at[1, 0:c].set(1.0)
    vecs = vecs.at[2, c:2 * c].set(1.0)
    vecs = vecs.at[3, f - 1].set(1.0)
    return wpack, vecs, row_wext, row_wdst


def net_forward(x, adj_bias, wpack, vecs, *, hidden, row_wext, row_wdst):
    n, f = x.shape
    kernel = _make_kernel(f, hidden, row_wext, row_wdst)
    vmem = lambda: pl.BlockSpec(memory_space=pltpu.MemorySpace.VMEM)
    return pl.pallas_call(
        kernel,
        out_shape=jax.ShapeDtypeStruct((n, f), jnp.float32),
        in_specs=[vmem(), vmem(), vmem(), vmem()],
        out_specs=vmem(),
    )(x, adj_bias, wpack, vecs)


def reference_forward(x, adj, wm, bm, w1, a1, w2, a2):
    """Pure-JAX f32 model of the same forward pass (for verification)."""
    x0 = jax.nn.relu(x @ wm + bm)

    def gat(w, a):
        z = x0 @ w
        s_src = z @ a[0]
        s_dst = z @ a[1]
        logits = jax.nn.leaky_relu(s_src[:, None] + s_dst[None, :],
                                   negative_slope=0.2)
        logits = jnp.where(adj > 0, logits, -jnp.inf)
        alpha = jax.nn.softmax(logits, axis=-1)
        return alpha @ z

    x1 = jax.nn.relu(gat(w1, a1))
    x2 = gat(w2, a2)
    x3 = jnp.max(x0, axis=-1, keepdims=True)
    y = jnp.concatenate([x1, x2, x3], axis=-1) + x
    return jax.nn.log_softmax(y, axis=-1)


if __name__ == "__main__":
    N, C, H = 16, 3, 32          # nodes, num_classes, hidden
    F = 2 * C + 1                # num_features must equal 2*C+1 for the residual add
    E = 40                       # number of edges

    key = jax.random.PRNGKey(0)
    ks = jax.random.split(key, 8)

    x = jax.random.normal(ks[0], (N, F), jnp.float32)

    # edge_index -> dense adjacency mask with self-loops -> additive bias
    src = jax.random.randint(ks[1], (E,), 0, N)
    dst = jax.random.randint(ks[2], (E,), 0, N)
    adj = jnp.zeros((N, N), jnp.float32).at[dst, src].set(1.0)
    adj = jnp.maximum(adj, jnp.eye(N, dtype=jnp.float32))
    adj_bias = (adj - 1.0) * 1e30

    # deterministic parameter init
    wm = jax.random.normal(ks[3], (F, H), jnp.float32) * 0.1     # Seq weight
    bm = jnp.zeros((H,), jnp.float32)                            # Seq bias
    w1 = jax.random.normal(ks[4], (H, C), jnp.float32) * 0.1     # conv1 weight
    a1 = jax.random.normal(ks[5], (2, C), jnp.float32) * 0.1     # conv1 attn (src, dst)
    w2 = jax.random.normal(ks[6], (H, C), jnp.float32) * 0.1     # conv2 weight
    a2 = jax.random.normal(ks[7], (2, C), jnp.float32) * 0.1     # conv2 attn (src, dst)

    wpack, vecs, row_wext, row_wdst = pack_params(wm, bm, w1, a1, w2, a2, C)

    out = net_forward(x, adj_bias, wpack, vecs,
                      hidden=H, row_wext=row_wext, row_wdst=row_wdst)
    jax.block_until_ready(out)

    ref = reference_forward(x, adj, wm, bm, w1, a1, w2, a2)
    assert out.shape == (N, F)
    assert bool(jnp.all(jnp.isfinite(out)))
    # bf16 MXU feeds + approx reciprocal -> loose tolerance vs f32 reference
    assert float(jnp.max(jnp.abs(out - ref))) < 5e-2
    print("KERNEL_OK")
</pallas_src>

<mosaic_0001>
module attributes {stable_mosaic.version = 11 : i64} {
  func.func @kernel(%arg0: memref<16x7xf32, #tpu.memory_space<vmem>>, %arg1: memref<16x16xf32, #tpu.memory_space<vmem>>, %arg2: memref<50x32xbf16, #tpu.memory_space<vmem>>, %arg3: memref<4x32xf32, #tpu.memory_space<vmem>>, %arg4: memref<16x7xf32, #tpu.memory_space<vmem>>) attributes {dimension_semantics = [], scalar_prefetch = 0 : i64, scratch_operands = 0 : i64, tpu.core_type = #tpu.core_type<tc>} {
    %c0 = arith.constant 0 : index
    %c0_0 = arith.constant 0 : index
    %0 = vector.load %arg0[%c0, %c0_0] : memref<16x7xf32, #tpu.memory_space<vmem>>, vector<16x7xf32>
    %c0_1 = arith.constant 0 : index
    %c0_2 = arith.constant 0 : index
    %1 = vector.load %arg1[%c0_1, %c0_2] : memref<16x16xf32, #tpu.memory_space<vmem>>, vector<16x16xf32>
    %c0_3 = arith.constant 0 : index
    %c0_4 = arith.constant 0 : index
    %2 = vector.load %arg3[%c0_3, %c0_4] : memref<4x32xf32, #tpu.memory_space<vmem>>, vector<1x32xf32>
    %c1 = arith.constant 1 : index
    %c0_5 = arith.constant 0 : index
    %3 = vector.load %arg3[%c1, %c0_5] : memref<4x32xf32, #tpu.memory_space<vmem>>, vector<1x7xf32>
    %c2 = arith.constant 2 : index
    %c0_6 = arith.constant 0 : index
    %4 = vector.load %arg3[%c2, %c0_6] : memref<4x32xf32, #tpu.memory_space<vmem>>, vector<1x7xf32>
    %c3 = arith.constant 3 : index
    %c0_7 = arith.constant 0 : index
    %5 = vector.load %arg3[%c3, %c0_7] : memref<4x32xf32, #tpu.memory_space<vmem>>, vector<1x7xf32>
    %c0_8 = arith.constant 0 : index
    %c0_9 = arith.constant 0 : index
    %6 = vector.load %arg2[%c0_8, %c0_9] : memref<50x32xbf16, #tpu.memory_space<vmem>>, vector<7x32xbf16>
    %c16 = arith.constant 16 : index
    %c0_10 = arith.constant 0 : index
    %7 = vector.load %arg2[%c16, %c0_10] : memref<50x32xbf16, #tpu.memory_space<vmem>>, vector<32x32xbf16>
    %c48 = arith.constant 48 : index
    %c0_11 = arith.constant 0 : index
    %8 = vector.load %arg2[%c48, %c0_11] : memref<50x32xbf16, #tpu.memory_space<vmem>>, vector<2x32xbf16>
    %9 = arith.truncf %0 : vector<16x7xf32> to vector<16x7xbf16>
    %cst = arith.constant dense<0.000000e+00> : vector<16x32xf32>
    %10 = tpu.matmul %9, %6, %cst {dimension_numbers = #tpu.dot_dimension_numbers<[1], [0], [0], [1], [0, 0, 1, 1], [], []>} : vector<16x7xbf16>, vector<7x32xbf16>, vector<16x32xf32> -> vector<16x32xf32>
    %11 = vector.broadcast %2 : vector<1x32xf32> to vector<16x32xf32>
    %12 = arith.addf %10, %11 : vector<16x32xf32>
    %cst_12 = arith.constant 0.000000e+00 : f32
    %13 = vector.broadcast %cst_12 : f32 to vector<16x32xf32>
    %14 = arith.maximumf %12, %13 : vector<16x32xf32>
    %15 = arith.truncf %14 : vector<16x32xf32> to vector<16x32xbf16>
    %cst_13 = arith.constant dense<0.000000e+00> : vector<16x32xf32>
    %16 = tpu.matmul %15, %7, %cst_13 {dimension_numbers = #tpu.dot_dimension_numbers<[1], [0], [0], [1], [0, 0, 1, 1], [], []>} : vector<16x32xbf16>, vector<32x32xbf16>, vector<16x32xf32> -> vector<16x32xf32>
    %17 = vector.extract_strided_slice %16 {offsets = [0, 0], sizes = [16, 7], strides = [1, 1]} : vector<16x32xf32> to vector<16x7xf32>
    %18 = arith.truncf %17 : vector<16x7xf32> to vector<16x7xbf16>
    %cst_14 = arith.constant dense<0.000000e+00> : vector<2x16xf32>
    %19 = tpu.matmul %8, %15, %cst_14 {dimension_numbers = #tpu.dot_dimension_numbers<[1], [1], [0], [0], [0, 0, 1, 0], [], []>} : vector<2x32xbf16>, vector<16x32xbf16>, vector<2x16xf32> -> vector<2x16xf32>
    %20 = vector.extract_strided_slice %16 {offsets = [0, 7], sizes = [16, 1], strides = [1, 1]} : vector<16x32xf32> to vector<16x1xf32>
    %21 = vector.extract_strided_slice %19 {offsets = [0, 0], sizes = [1, 16], strides = [1, 1]} : vector<2x16xf32> to vector<1x16xf32>
    %22 = vector.broadcast %20 : vector<16x1xf32> to vector<16x16xf32>
    %23 = vector.broadcast %21 : vector<1x16xf32> to vector<16x16xf32>
    %24 = arith.addf %22, %23 : vector<16x16xf32>
    %cst_15 = arith.constant 0.000000e+00 : f32
    %25 = vector.broadcast %cst_15 : f32 to vector<16x16xf32>
    %26 = arith.cmpf ogt, %24, %25 : vector<16x16xf32>
    %cst_16 = arith.constant 2.000000e-01 : f32
    %27 = vector.broadcast %cst_16 : f32 to vector<16x16xf32>
    %28 = arith.mulf %27, %24 : vector<16x16xf32>
    %29 = arith.select %26, %24, %28 : vector<16x16xi1>, vector<16x16xf32>
    %30 = arith.addf %29, %1 : vector<16x16xf32>
    %cst_17 = arith.constant dense<0xFF800000> : vector<16xf32>
    %31 = vector.multi_reduction <maximumf>, %30, %cst_17 [1] : vector<16x16xf32> to vector<16xf32>
    %32 = vector.shape_cast %31 : vector<16xf32> to vector<16x1xf32>
    %33 = vector.broadcast %32 : vector<16x1xf32> to vector<16x16xf32>
    %34 = arith.subf %30, %33 : vector<16x16xf32>
    %35 = math.exp %34 : vector<16x16xf32>
    %cst_18 = arith.constant dense<0.000000e+00> : vector<16xf32>
    %36 = vector.multi_reduction <add>, %35, %cst_18 [1] : vector<16x16xf32> to vector<16xf32>
    %37 = vector.shape_cast %36 : vector<16xf32> to vector<16x1xf32>
    %38 = tpu.reciprocal %37 {approx = true} : vector<16x1xf32> -> vector<16x1xf32>
    %39 = vector.broadcast %38 : vector<16x1xf32> to vector<16x16xf32>
    %40 = arith.mulf %35, %39 : vector<16x16xf32>
    %41 = arith.truncf %40 : vector<16x16xf32> to vector<16x16xbf16>
    %cst_19 = arith.constant dense<0.000000e+00> : vector<16x7xf32>
    %42 = tpu.matmul %41, %18, %cst_19 {dimension_numbers = #tpu.dot_dimension_numbers<[1], [0], [0], [1], [0, 0, 1, 1], [], []>} : vector<16x16xbf16>, vector<16x7xbf16>, vector<16x7xf32> -> vector<16x7xf32>
    %cst_20 = arith.constant 0.000000e+00 : f32
    %43 = vector.broadcast %cst_20 : f32 to vector<16x7xf32>
    %44 = arith.maximumf %42, %43 : vector<16x7xf32>
    %45 = vector.broadcast %3 : vector<1x7xf32> to vector<16x7xf32>
    %46 = arith.mulf %44, %45 : vector<16x7xf32>
    %47 = vector.extract_strided_slice %16 {offsets = [0, 8], sizes = [16, 1], strides = [1, 1]} : vector<16x32xf32> to vector<16x1xf32>
    %48 = vector.extract_strided_slice %19 {offsets = [1, 0], sizes = [1, 16], strides = [1, 1]} : vector<2x16xf32> to vector<1x16xf32>
    %49 = vector.broadcast %47 : vector<16x1xf32> to vector<16x16xf32>
    %50 = vector.broadcast %48 : vector<1x16xf32> to vector<16x16xf32>
    %51 = arith.addf %49, %50 : vector<16x16xf32>
    %cst_21 = arith.constant 0.000000e+00 : f32
    %52 = vector.broadcast %cst_21 : f32 to vector<16x16xf32>
    %53 = arith.cmpf ogt, %51, %52 : vector<16x16xf32>
    %cst_22 = arith.constant 2.000000e-01 : f32
    %54 = vector.broadcast %cst_22 : f32 to vector<16x16xf32>
    %55 = arith.mulf %54, %51 : vector<16x16xf32>
    %56 = arith.select %53, %51, %55 : vector<16x16xi1>, vector<16x16xf32>
    %57 = arith.addf %56, %1 : vector<16x16xf32>
    %cst_23 = arith.constant dense<0xFF800000> : vector<16xf32>
    %58 = vector.multi_reduction <maximumf>, %57, %cst_23 [1] : vector<16x16xf32> to vector<16xf32>
    %59 = vector.shape_cast %58 : vector<16xf32> to vector<16x1xf32>
    %60 = vector.broadcast %59 : vector<16x1xf32> to vector<16x16xf32>
    %61 = arith.subf %57, %60 : vector<16x16xf32>
    %62 = math.exp %61 : vector<16x16xf32>
    %cst_24 = arith.constant dense<0.000000e+00> : vector<16xf32>
    %63 = vector.multi_reduction <add>, %62, %cst_24 [1] : vector<16x16xf32> to vector<16xf32>
    %64 = vector.shape_cast %63 : vector<16xf32> to vector<16x1xf32>
    %65 = tpu.reciprocal %64 {approx = true} : vector<16x1xf32> -> vector<16x1xf32>
    %66 = vector.broadcast %65 : vector<16x1xf32> to vector<16x16xf32>
    %67 = arith.mulf %62, %66 : vector<16x16xf32>
    %68 = arith.truncf %67 : vector<16x16xf32> to vector<16x16xbf16>
    %cst_25 = arith.constant dense<0.000000e+00> : vector<16x7xf32>
    %69 = tpu.matmul %68, %18, %cst_25 {dimension_numbers = #tpu.dot_dimension_numbers<[1], [0], [0], [1], [0, 0, 1, 1], [], []>} : vector<16x16xbf16>, vector<16x7xbf16>, vector<16x7xf32> -> vector<16x7xf32>
    %70 = vector.broadcast %4 : vector<1x7xf32> to vector<16x7xf32>
    %71 = arith.mulf %69, %70 : vector<16x7xf32>
    %cst_26 = arith.constant dense<0xFF800000> : vector<16xf32>
    %72 = vector.multi_reduction <maximumf>, %14, %cst_26 [1] : vector<16x32xf32> to vector<16xf32>
    %73 = vector.shape_cast %72 : vector<16xf32> to vector<16x1xf32>
    %74 = vector.broadcast %73 : vector<16x1xf32> to vector<16x7xf32>
    %75 = vector.broadcast %5 : vector<1x7xf32> to vector<16x7xf32>
    %76 = arith.mulf %74, %75 : vector<16x7xf32>
    %77 = arith.addf %46, %71 : vector<16x7xf32>
    %78 = arith.addf %77, %76 : vector<16x7xf32>
    %79 = arith.addf %78, %0 : vector<16x7xf32>
    %cst_27 = arith.constant dense<0xFF800000> : vector<16xf32>
    %80 = vector.multi_reduction <maximumf>, %79, %cst_27 [1] : vector<16x7xf32> to vector<16xf32>
    %81 = vector.shape_cast %80 : vector<16xf32> to vector<16x1xf32>
    %82 = vector.broadcast %81 : vector<16x1xf32> to vector<16x7xf32>
    %83 = arith.subf %79, %82 : vector<16x7xf32>
    %84 = math.exp %83 : vector<16x7xf32>
    %cst_28 = arith.constant dense<0.000000e+00> : vector<16xf32>
    %85 = vector.multi_reduction <add>, %84, %cst_28 [1] : vector<16x7xf32> to vector<16xf32>
    %86 = vector.shape_cast %85 : vector<16xf32> to vector<16x1xf32>
    %87 = math.log %86 : vector<16x1xf32>
    %88 = vector.broadcast %87 : vector<16x1xf32> to vector<16x7xf32>
    %89 = arith.subf %83, %88 : vector<16x7xf32>
    %c0_29 = arith.constant 0 : index
    %c0_30 = arith.constant 0 : index
    %90 = vector.load %arg4[%c0_29, %c0_30] : memref<16x7xf32, #tpu.memory_space<vmem>>, vector<16x7xf32>
    tpu.vector_store %arg4[%c0_29, %c0_30], %89 {strides = array<i32>} : memref<16x7xf32, #tpu.memory_space<vmem>>, vector<16x7xf32>,
    return
  }
}

</mosaic_0001>

<llo_original>
// kernel: tpu_custom_call.1
$region0: #{tpu_custom_call.1}
  #allocation0 [shape = 'u32[]', space=smem, size = 0x4, offset = 0x4, fixed_abs, tag = 'smem constant byte address 0x4 - core index']
  #allocation1 [shape = 'u32[72,128]{1,0:T(1,128)}', space=vmem, size = 0x9000, scoped, tag = 'internal scratch']
  %s0 = inlined_call_operand.vmem [shape: f32[16,7], index: 0, kind: input, shape index: {}]
  %s1 = inlined_call_operand.vmem [shape: f32[16,16], index: 1, kind: input, shape index: {}]
  %s2 = inlined_call_operand.vmem [shape: bf16[50,32], index: 2, kind: input, shape index: {}]
  %s3 = inlined_call_operand.vmem [shape: f32[4,32], index: 3, kind: input, shape index: {}]
  %s4 = inlined_call_operand.vmem [shape: f32[16,7], index: 4, kind: output, shape index: {}]
  %s5 = sld [smem:[#allocation0]]
  $region26: #{tpu_custom_call.1} parent=0
    _
  %s7 = ssub.s32 1, %s5
  %s8 = scalar_select 0, %s7, %s5
  // Predicated region
  $region2: #{tpu_custom_call.1} parent=0 // pred_check
    _
  $region3: #{tpu_custom_call.1} parent=0 // pred_check_branch
    %10 = sbr.rel (0) target = $region5
  $region4: #{tpu_custom_call.1} parent=0 // pred_region
    _
  $region5: #{tpu_custom_call.1} parent=0 // pred_fallthru
    _
  // Predicated region
  $region6: #{tpu_custom_call.1} parent=0 // pred_check
    _
  $region7: #{tpu_custom_call.1} parent=0 // pred_check_branch
    %12 = sbr.rel (0) target = $region9
  $region8: #{tpu_custom_call.1} parent=0 // pred_region
    _
  $region9: #{tpu_custom_call.1} parent=0 // pred_fallthru
    _
  // Predicated region
  $region10: #{tpu_custom_call.1} parent=0 // pred_check
    _
  $region11: #{tpu_custom_call.1} parent=0 // pred_check_branch
    %14 = sbr.rel (0) target = $region13
  $region12: #{tpu_custom_call.1} parent=0 // pred_region
    _
  $region13: #{tpu_custom_call.1} parent=0 // pred_fallthru
    _
  // Predicated region
  $region14: #{tpu_custom_call.1} parent=0 // pred_check
    _
  $region15: #{tpu_custom_call.1} parent=0 // pred_check_branch
    %16 = sbr.rel (0) target = $region17
  $region16: #{tpu_custom_call.1} parent=0 // pred_region
    _
  $region17: #{tpu_custom_call.1} parent=0 // pred_fallthru
    _
  %v18 = vld [vmem:[%s0] sm:$0xff]
  %v19 = vld [vmem:[%s0 + $0x8] sm:$0xff]
  %v20 = vld [vmem:[%s1] sm:$0xff]
  %v21 = vld [vmem:[%s1 + $0x8] sm:$0xff]
  %v22 = vld [vmem:[%s3] sm:$0x1]
  %v23 = vld [vmem:[%s3 + $0x1] sm:$0x1]
  %v24 = vld [vmem:[%s3 + $0x2] sm:$0x1]
  %v25 = vld [vmem:[%s3 + $0x3] sm:$0x1]
  %v26 = vld [vmem:[%s2] sm:$0xf]
  %v27 = vld [vmem:[%s2 + $0x8] sm:$0xf]
  %v28 = vld [vmem:[%s2 + $0xc] sm:$0xf]
  %v29 = vld [vmem:[%s2 + $0x10] sm:$0xf]
  %v30 = vld [vmem:[%s2 + $0x14] sm:$0xf]
  %v31 = vld [vmem:[%s2 + $0x18] sm:$0x1]
  %v32 = vpack.c.bf16 %v19, %v18
  %v33 = vperm.slane %v22, 0
  %vm34 = vcmask 56320
  %v36 = vsel %vm34, %v32, 0
  %vm38 = vcmask 1042432
  %vm39 = vcmask 1043456
  %v40 = vsel %vm38, 4294967295, 65535
  %v41 = vsel %vm39, %v40, 0
  %v43 = vand.u32 %v26, %v41
  %45 = vmatpush.bf16.msra.mxu0 0
  %46 = vmatpush.bf16.msra.mxu0 0
  %47 = vmatpush.bf16.msra.mxu0 0
  %48 = vmatpush.bf16.msra.mxu0 0
  %49 = vmatpush.bf16.msra.mxu0 0
  %50 = vmatpush.bf16.msra.mxu0 0
  %51 = vmatpush.bf16.msra.mxu0 0
  %52 = vmatpush.bf16.msra.mxu0 %v43
  %53 = vmatmul.bf16.gmra.mxu0 %v36
  %v54 = vpop.f32.mrf.mxu0
  %v55 = vadd.f32 %v33, %v54
  %v56 = vpop.f32.mrf.mxu0
  %v57 = vadd.f32 %v33, %v56
  %58 = vdwg.mxu0
  %v59 = vmax.f32 %v55, 0.0
  %v60 = vmax.f32 %v57, 0.0
  %v61 = vpack.c.bf16 %v60, %v59
  %v66 = vunpack.c.l.b16 %v27
  %v67 = vunpack.c.l.b16 %v28
  %v68 = vunpack.c.l.b16 %v29
  %v69 = vunpack.c.l.b16 %v30
  %v70 = vpack.c.b16 %v67, %v66
  %v71 = vpack.c.b16 %v69, %v68
  %vm74 = vcmask 261120
  %v76 = vsel %vm74, %v61, 0
  %78 = vmatpush.bf16.msra.mxu0 0
  %79 = vmatpush.bf16.msra.mxu0 0
  %80 = vmatpush.bf16.msra.mxu0 0
  %81 = vmatpush.bf16.msra.mxu0 0
  %82 = vmatpush.bf16.msra.mxu0 0
  %83 = vmatpush.bf16.msra.mxu0 0
  %84 = vmatpush.bf16.msra.mxu0 %v71
  %85 = vmatpush.bf16.msra.mxu0 %v70
  %86 = vmatmul.bf16.gmra.mxu0 %v76
  %v87 = vpop.f32.mrf.mxu0
  %v88 = vadd.f32 0.0, %v87
  %v89 = vpop.f32.mrf.mxu0
  %v90 = vadd.f32 0.0, %v89
  %91 = vdwg.mxu0
  %v92 = vpack.c.bf16 %v90, %v88
  %v94 = vsel %vm74, %v31, 0
  %96 = vmatpush.bf16.xpose.msra.mxu0 0
  %97 = vmatpush.bf16.xpose.msra.mxu0 0
  %98 = vmatpush.bf16.xpose.msra.mxu0 0
  %99 = vmatpush.bf16.xpose.msra.mxu0 0
  %100 = vmatpush.bf16.xpose.msra.mxu0 0
  %101 = vmatpush.bf16.xpose.msra.mxu0 0
  %102 = vmatpush.bf16.xpose.msra.mxu0 0
  %103 = vmatpush.bf16.xpose.msra.mxu0 %v76
  %104 = vmatmul.bf16.gmra.mxu0 %v94
  %v105 = vpop.f32.mrf.mxu0
  %v106 = vadd.f32 0.0, %v105
  %v107 = vpop.f32.mrf.mxu0
  %108 = vdwg.mxu0
  %110 = vset.pattern.permute.xlu0 7
  %111 = vperm.xlu0 %110, %v88
  %v112 = vpop.permute.xlu0 %111
  %115 = vset.pattern.permute.xlu0 7
  %116 = vperm.xlu0 %115, %v90
  %v117 = vpop.permute.xlu0 %116
  %v119 = vperm.slane %v106, 0
  %v120 = vadd.f32 %v112, %v119
  %v121 = vadd.f32 %v117, %v119
  %vm122 = vcmp.gt.f32.partialorder %v120, 0.0
  %vm123 = vcmp.gt.f32.partialorder %v121, 0.0
  %v124 = vmul.f32 %v120, 0.2
  %v125 = vmul.f32 %v121, 0.2
  %v126 = vsel %vm122, %v120, %v124
  %v127 = vsel %vm123, %v121, %v125
  %v128 = vadd.f32 %v126, %v20
  %v129 = vadd.f32 %v127, %v21
  %vm130 = vcmask 130048
  %v131 = vsel %vm130, %v128, -inf
  %132 = vmax.xlane.f32.xlu0 %v131
  %v133 = vpop.xlane.xlu0 %132
  %v134 = vsel %vm130, %v129, -inf
  %135 = vmax.xlane.f32.xlu0 %v134
  %v136 = vpop.xlane.xlu0 %135
  %v137 = vsub.f32 %v128, %v133
  %v138 = vsub.f32 %v129, %v136
  %v139 = vmul.f32 %v137, 1.442695
  %v140 = vpow.pop %v139
  %v141 = vmul.f32 %v138, 1.442695
  %v142 = vpow.pop %v141
  %v143 = vsel %vm130, %v140, 0.0
  %144 = vadd.xlane.f32.xlu0 %v143
  %v145 = vpop.xlane.xlu0 %144
  %v146 = vsel %vm130, %v142, 0.0
  %147 = vadd.xlane.f32.xlu0 %v146
  %v148 = vpop.xlane.xlu0 %147
  %v149 = vrcp.pop %v145
  %v150 = vrcp.pop %v148
  %v151 = vmul.f32 %v140, %v149
  %v152 = vmul.f32 %v142, %v150
  %v153 = vpack.c.bf16 %v152, %v151
  %v155 = vsel %vm130, %v153, 0
  %157 = vmatpush.bf16.msra.mxu0 0
  %158 = vmatpush.bf16.msra.mxu0 0
  %159 = vmatpush.bf16.msra.mxu0 0
  %160 = vmatpush.bf16.msra.mxu0 0
  %161 = vmatpush.bf16.msra.mxu0 0
  %162 = vmatpush.bf16.msra.mxu0 0
  %163 = vmatpush.bf16.msra.mxu0 0
  %164 = vmatpush.bf16.msra.mxu0 %v92
  %165 = vmatmul.bf16.gmra.mxu0 %v155
  %v166 = vpop.f32.mrf.mxu0
  %v167 = vadd.f32 0.0, %v166
  %v168 = vpop.f32.mrf.mxu0
  %v169 = vadd.f32 0.0, %v168
  %170 = vdwg.mxu0
  %v171 = vmax.f32 %v167, 0.0
  %v172 = vmax.f32 %v169, 0.0
  %v173 = vperm.slane %v23, 0
  %v174 = vmul.f32 %v171, %v173
  %v175 = vmul.f32 %v172, %v173
  %176 = vset.pattern.permute.xlu0 8
  %177 = vperm.xlu0 %176, %v88
  %v178 = vpop.permute.xlu0 %177
  %180 = vset.pattern.permute.xlu0 8
  %181 = vperm.xlu0 %180, %v90
  %v182 = vpop.permute.xlu0 %181
  %v184 = vperm.slane %v106, 1
  %v185 = vadd.f32 %v178, %v184
  %v186 = vadd.f32 %v182, %v184
  %vm187 = vcmp.gt.f32.partialorder %v185, 0.0
  %vm188 = vcmp.gt.f32.partialorder %v186, 0.0
  %v189 = vmul.f32 %v185, 0.2
  %v190 = vmul.f32 %v186, 0.2
  %v191 = vsel %vm187, %v185, %v189
  %v192 = vsel %vm188, %v186, %v190
  %v193 = vadd.f32 %v191, %v20
  %v194 = vadd.f32 %v192, %v21
  %v195 = vsel %vm130, %v193, -inf
  %196 = vmax.xlane.f32.xlu0 %v195
  %v197 = vpop.xlane.xlu0 %196
  %v198 = vsel %vm130, %v194, -inf
  %199 = vmax.xlane.f32.xlu0 %v198
  %v200 = vpop.xlane.xlu0 %199
  %v201 = vsub.f32 %v193, %v197
  %v202 = vsub.f32 %v194, %v200
  %v203 = vmul.f32 %v201, 1.442695
  %v204 = vpow.pop %v203
  %v205 = vmul.f32 %v202, 1.442695
  %v206 = vpow.pop %v205
  %v207 = vsel %vm130, %v204, 0.0
  %208 = vadd.xlane.f32.xlu0 %v207
  %v209 = vpop.xlane.xlu0 %208
  %v210 = vsel %vm130, %v206, 0.0
  %211 = vadd.xlane.f32.xlu0 %v210
  %v212 = vpop.xlane.xlu0 %211
  %v213 = vrcp.pop %v209
  %v214 = vrcp.pop %v212
  %v215 = vmul.f32 %v204, %v213
  %v216 = vmul.f32 %v206, %v214
  %v217 = vpack.c.bf16 %v216, %v215
  %v219 = vsel %vm130, %v217, 0
  %221 = vmatpush.bf16.msra.mxu0 0
  %222 = vmatpush.bf16.msra.mxu0 0
  %223 = vmatpush.bf16.msra.mxu0 0
  %224 = vmatpush.bf16.msra.mxu0 0
  %225 = vmatpush.bf16.msra.mxu0 0
  %226 = vmatpush.bf16.msra.mxu0 0
  %227 = vmatpush.bf16.msra.mxu0 0
  %228 = vmatpush.bf16.msra.mxu0 %v92
  %229 = vmatmul.bf16.gmra.mxu0 %v219
  %v230 = vpop.f32.mrf.mxu0
  %v231 = vadd.f32 0.0, %v230
  %v232 = vpop.f32.mrf.mxu0
  %v233 = vadd.f32 0.0, %v232
  %234 = vdwg.mxu0
  %v235 = vperm.slane %v24, 0
  %v236 = vmul.f32 %v231, %v235
  %v237 = vmul.f32 %v233, %v235
  %v238 = vsel %vm74, %v59, -inf
  %239 = vmax.xlane.f32.xlu0 %v238
  %v240 = vpop.xlane.xlu0 %239
  %v241 = vsel %vm74, %v60, -inf
  %242 = vmax.xlane.f32.xlu0 %v241
  %v243 = vpop.xlane.xlu0 %242
  %v244 = vperm.slane %v25, 0
  %v245 = vmul.f32 %v240, %v244
  %v246 = vmul.f32 %v243, %v244
  %v247 = vadd.f32 %v174, %v236
  %v248 = vadd.f32 %v175, %v237
  %v249 = vadd.f32 %v247, %v245
  %v250 = vadd.f32 %v248, %v246
  %v251 = vadd.f32 %v249, %v18
  %v252 = vadd.f32 %v250, %v19
  %v253 = vsel %vm34, %v251, -inf
  %254 = vmax.xlane.f32.xlu0 %v253
  %v255 = vpop.xlane.xlu0 %254
  %v256 = vsel %vm34, %v252, -inf
  %257 = vmax.xlane.f32.xlu0 %v256
  %v258 = vpop.xlane.xlu0 %257
  %v259 = vsub.f32 %v251, %v255
  %v260 = vsub.f32 %v252, %v258
  %v261 = vmul.f32 %v259, 1.442695
  %v262 = vpow.pop %v261
  %v263 = vmul.f32 %v260, 1.442695
  %v264 = vpow.pop %v263
  %v265 = vsel %vm34, %v262, 0.0
  %266 = vadd.xlane.f32.xlu0 %v265
  %v267 = vpop.xlane.xlu0 %266
  %v268 = vsel %vm34, %v264, 0.0
  %269 = vadd.xlane.f32.xlu0 %v268
  %v270 = vpop.xlane.xlu0 %269
  %v271 = vlog2.pop %v267
  %v272 = vmul.f32 %v271, 0.6931472
  %v273 = vlog2.pop %v270
  %v274 = vmul.f32 %v273, 0.6931472
  %v275 = vsub.f32 %v259, %v272
  %v276 = vsub.f32 %v260, %v274
  %277 = vst.msk [vmem:[%s4] sm:$0xff] %vm34, %v275
  %278 = vst.msk [vmem:[%s4 + $0x8] sm:$0xff] %vm34, %v276
  // Predicated region
  $region18: #{tpu_custom_call.1} parent=0 // pred_check
    _
  $region19: #{tpu_custom_call.1} parent=0 // pred_check_branch
    %280 = sbr.rel (0) target = $region21
  $region20: #{tpu_custom_call.1} parent=0 // pred_region
    _
  $region21: #{tpu_custom_call.1} parent=0 // pred_fallthru
    _
  // Predicated region
  $region22: #{tpu_custom_call.1} parent=0 // pred_check
    _
  $region23: #{tpu_custom_call.1} parent=0 // pred_check_branch
    %282 = sbr.rel (0) target = $region25
  $region24: #{tpu_custom_call.1} parent=0 // pred_region
    _
  $region25: #{tpu_custom_call.1} parent=0 // pred_fallthru
    _

</llo_original>
